<compile_context>
chip_gen: v7x
topology: tpu7x:2x2x1
jax: 0.10.0
libtpu: 0.0.40
codegen_flags: <defaults>
</compile_context>

<pallas_src>
import functools

import jax
import jax.numpy as jnp
from jax.experimental import pallas as pl
from jax.experimental.pallas import tpu as pltpu

N_JOINTS = 27
D_IN = 9
D_HID = 300
D_OUT = N_JOINTS * 3      # 81

# Lane-aligned (multiple-of-128) padded feature widths used inside the kernel.
D_HID_P = 384             # 3 * 128
D_OUT_P = 128


def _round_up(x, m):
    return (x + m - 1) // m * m


def mlp_kernel(x_ref, w1_ref, b1_ref, w2_ref, b2_ref, w3_ref, b3_ref, o_ref):
    # One batch tile per grid step; all weights are VMEM-resident (constant
    # index_map), so the whole 3-layer forward runs without HBM round-trips
    # between layers.
    x = x_ref[...]                                                 # (TB, 9)
    h1 = jnp.dot(x, w1_ref[...], preferred_element_type=jnp.float32)
    h1 = jnp.maximum(h1 + b1_ref[...], 0.0)                        # (TB, 384)
    h2 = jnp.dot(h1, w2_ref[...], preferred_element_type=jnp.float32)
    h2 = jnp.maximum(h2 + b2_ref[...], 0.0)                        # (TB, 384)
    y = jnp.dot(h2, w3_ref[...], preferred_element_type=jnp.float32)
    o_ref[...] = (y + b3_ref[...]).astype(o_ref.dtype)             # (TB, 128)


@functools.partial(jax.jit, static_argnames=("block_b",))
def mlp_forward(x, params, *, block_b=256):
    """x: (B, 9) float32 -> (B, 27, 3) float32."""
    w1, b1, w2, b2, w3, b3 = params
    B = x.shape[0]

    # --- zero-pad weights/biases to lane-aligned widths (padding is exactly 0,
    #     so ReLU(0 + 0) = 0 and the sliced output is unchanged) -------------
    w1p = jnp.zeros((D_IN, D_HID_P), jnp.float32).at[:, :D_HID].set(w1)
    b1p = jnp.zeros((1, D_HID_P), jnp.float32).at[:, :D_HID].set(b1.reshape(1, -1))
    w2p = jnp.zeros((D_HID_P, D_HID_P), jnp.float32).at[:D_HID, :D_HID].set(w2)
    b2p = jnp.zeros((1, D_HID_P), jnp.float32).at[:, :D_HID].set(b2.reshape(1, -1))
    w3p = jnp.zeros((D_HID_P, D_OUT_P), jnp.float32).at[:D_HID, :D_OUT].set(w3)
    b3p = jnp.zeros((1, D_OUT_P), jnp.float32).at[:, :D_OUT].set(b3.reshape(1, -1))

    # --- batch tiling: tile is a multiple of 8, shrinks for tiny batches ----
    tb = min(block_b, _round_up(B, 8))
    b_pad = _round_up(B, tb)
    xp = x if b_pad == B else jnp.pad(x, ((0, b_pad - B), (0, 0)))
    grid = (b_pad // tb,)

    def const_spec(shape):
        # Weights / biases: same block for every grid step -> DMA'd once,
        # stay resident in VMEM.
        return pl.BlockSpec(shape, lambda i: (0, 0))

    out = pl.pallas_call(
        mlp_kernel,
        out_shape=jax.ShapeDtypeStruct((b_pad, D_OUT_P), jnp.float32),
        grid=grid,
        in_specs=[
            pl.BlockSpec((tb, D_IN), lambda i: (i, 0)),    # x tile
            const_spec((D_IN, D_HID_P)),                   # w1
            const_spec((1, D_HID_P)),                      # b1
            const_spec((D_HID_P, D_HID_P)),                # w2
            const_spec((1, D_HID_P)),                      # b2
            const_spec((D_HID_P, D_OUT_P)),                # w3
            const_spec((1, D_OUT_P)),                      # b3
        ],
        out_specs=pl.BlockSpec((tb, D_OUT_P), lambda i: (i, 0)),
        compiler_params=pltpu.CompilerParams(
            dimension_semantics=("parallel",),             # megacore on v7x
            vmem_limit_bytes=32 * 1024 * 1024,             # safe on v5e/v6e/v7x
        ),
    )(xp, w1p, b1p, w2p, b2p, w3p, b3p)

    # Slice off batch/feature padding; final reshape is pure layout glue.
    return out[:B, :D_OUT].reshape(B, N_JOINTS, 3)


def init_params(key):
    """Deterministic init mimicking nn.Linear's uniform(-1/sqrt(fan_in), +)."""
    ks = jax.random.split(key, 6)

    def linear(kw, kb, fan_in, fan_out):
        bound = 1.0 / jnp.sqrt(jnp.float32(fan_in))
        # stored as (in, out) so the kernel does x @ W  (== x @ W_torch.T)
        w = jax.random.uniform(kw, (fan_in, fan_out), jnp.float32, -bound, bound)
        b = jax.random.uniform(kb, (1, fan_out), jnp.float32, -bound, bound)
        return w, b

    w1, b1 = linear(ks[0], ks[1], D_IN, D_HID)
    w2, b2 = linear(ks[2], ks[3], D_HID, D_HID)
    w3, b3 = linear(ks[4], ks[5], D_HID, D_OUT)
    return (w1, b1, w2, b2, w3, b3)


def _reference(x, params):
    w1, b1, w2, b2, w3, b3 = params
    h1 = jnp.maximum(x @ w1 + b1, 0.0)
    h2 = jnp.maximum(h1 @ w2 + b2, 0.0)
    return (h2 @ w3 + b3).reshape(x.shape[0], N_JOINTS, 3)


if __name__ == "__main__":
    key = jax.random.PRNGKey(0)
    k_params, k_x1, k_x2 = jax.random.split(key, 3)

    params = init_params(k_params)

    # Small batch: single block, tile shrinks to round_up(8, 8) = 8.
    B1 = 8
    x1 = jax.random.normal(k_x1, (B1, D_IN), dtype=jnp.float32)
    y1 = jax.block_until_ready(mlp_forward(x1, params))
    ref1 = _reference(x1, params)
    assert y1.shape == (B1, N_JOINTS, 3), y1.shape
    assert jnp.allclose(y1, ref1, atol=1e-4, rtol=1e-4), float(jnp.max(jnp.abs(y1 - ref1)))

    # Batch with a non-divisible tail: exercises the grid + batch-padding path.
    B2 = 200
    x2 = jax.random.normal(k_x2, (B2, D_IN), dtype=jnp.float32)
    y2 = jax.block_until_ready(mlp_forward(x2, params, block_b=128))  # grid=(2,)
    ref2 = _reference(x2, params)
    assert y2.shape == (B2, N_JOINTS, 3), y2.shape
    assert jnp.allclose(y2, ref2, atol=1e-4, rtol=1e-4), float(jnp.max(jnp.abs(y2 - ref2)))

    print("KERNEL_OK")
</pallas_src>

<mosaic_0001>
module attributes {stable_mosaic.version = 11 : i64} {
  func.func @mlp_kernel(%arg0: i32, %arg1: memref<8x9xf32, #tpu.memory_space<vmem>>, %arg2: memref<9x384xf32, #tpu.memory_space<vmem>>, %arg3: memref<1x384xf32, #tpu.memory_space<vmem>>, %arg4: memref<384x384xf32, #tpu.memory_space<vmem>>, %arg5: memref<1x384xf32, #tpu.memory_space<vmem>>, %arg6: memref<384x128xf32, #tpu.memory_space<vmem>>, %arg7: memref<1x128xf32, #tpu.memory_space<vmem>>, %arg8: memref<8x128xf32, #tpu.memory_space<vmem>>) attributes {dimension_semantics = [#tpu.dimension_semantics<parallel>], iteration_bounds = array<i64: 1>, scalar_prefetch = 0 : i64, scratch_operands = 0 : i64, tpu.core_type = #tpu.core_type<tc>, window_params = [{transform_indices = @transform_0, window_bounds = array<i64: 8, 9>}, {pipeline_mode = #tpu.pipeline_mode<synchronous>, transform_indices = @transform_1, window_bounds = array<i64: 9, 384>}, {pipeline_mode = #tpu.pipeline_mode<synchronous>, transform_indices = @transform_2, window_bounds = array<i64: 1, 384>}, {pipeline_mode = #tpu.pipeline_mode<synchronous>, transform_indices = @transform_3, window_bounds = array<i64: 384, 384>}, {pipeline_mode = #tpu.pipeline_mode<synchronous>, transform_indices = @transform_4, window_bounds = array<i64: 1, 384>}, {pipeline_mode = #tpu.pipeline_mode<synchronous>, transform_indices = @transform_5, window_bounds = array<i64: 384, 128>}, {pipeline_mode = #tpu.pipeline_mode<synchronous>, transform_indices = @transform_6, window_bounds = array<i64: 1, 128>}, {transform_indices = @transform_7, window_bounds = array<i64: 8, 128>}]} {
    %c0 = arith.constant 0 : index
    %c0_0 = arith.constant 0 : index
    %0 = vector.load %arg1[%c0, %c0_0] : memref<8x9xf32, #tpu.memory_space<vmem>>, vector<8x9xf32>
    %c0_1 = arith.constant 0 : index
    %c0_2 = arith.constant 0 : index
    %1 = vector.load %arg2[%c0_1, %c0_2] : memref<9x384xf32, #tpu.memory_space<vmem>>, vector<9x384xf32>
    %cst = arith.constant dense<0.000000e+00> : vector<8x384xf32>
    %2 = tpu.matmul %0, %1, %cst {dimension_numbers = #tpu.dot_dimension_numbers<[1], [0], [0], [1], [0, 0, 1, 1], [], []>} : vector<8x9xf32>, vector<9x384xf32>, vector<8x384xf32> -> vector<8x384xf32>
    %c0_3 = arith.constant 0 : index
    %c0_4 = arith.constant 0 : index
    %3 = vector.load %arg3[%c0_3, %c0_4] : memref<1x384xf32, #tpu.memory_space<vmem>>, vector<1x384xf32>
    %4 = vector.broadcast %3 : vector<1x384xf32> to vector<8x384xf32>
    %5 = arith.addf %2, %4 : vector<8x384xf32>
    %cst_5 = arith.constant 0.000000e+00 : f32
    %6 = vector.broadcast %cst_5 : f32 to vector<8x384xf32>
    %7 = arith.maximumf %5, %6 : vector<8x384xf32>
    %c0_6 = arith.constant 0 : index
    %c0_7 = arith.constant 0 : index
    %8 = vector.load %arg4[%c0_6, %c0_7] : memref<384x384xf32, #tpu.memory_space<vmem>>, vector<384x384xf32>
    %cst_8 = arith.constant dense<0.000000e+00> : vector<8x384xf32>
    %9 = tpu.matmul %7, %8, %cst_8 {dimension_numbers = #tpu.dot_dimension_numbers<[1], [0], [0], [1], [0, 0, 1, 1], [], []>} : vector<8x384xf32>, vector<384x384xf32>, vector<8x384xf32> -> vector<8x384xf32>
    %c0_9 = arith.constant 0 : index
    %c0_10 = arith.constant 0 : index
    %10 = vector.load %arg5[%c0_9, %c0_10] : memref<1x384xf32, #tpu.memory_space<vmem>>, vector<1x384xf32>
    %11 = vector.broadcast %10 : vector<1x384xf32> to vector<8x384xf32>
    %12 = arith.addf %9, %11 : vector<8x384xf32>
    %cst_11 = arith.constant 0.000000e+00 : f32
    %13 = vector.broadcast %cst_11 : f32 to vector<8x384xf32>
    %14 = arith.maximumf %12, %13 : vector<8x384xf32>
    %c0_12 = arith.constant 0 : index
    %c0_13 = arith.constant 0 : index
    %15 = vector.load %arg6[%c0_12, %c0_13] : memref<384x128xf32, #tpu.memory_space<vmem>>, vector<384x128xf32>
    %cst_14 = arith.constant dense<0.000000e+00> : vector<8x128xf32>
    %16 = tpu.matmul %14, %15, %cst_14 {dimension_numbers = #tpu.dot_dimension_numbers<[1], [0], [0], [1], [0, 0, 1, 1], [], []>} : vector<8x384xf32>, vector<384x128xf32>, vector<8x128xf32> -> vector<8x128xf32>
    %c0_15 = arith.constant 0 : index
    %c0_16 = arith.constant 0 : index
    %17 = vector.load %arg7[%c0_15, %c0_16] : memref<1x128xf32, #tpu.memory_space<vmem>>, vector<1x128xf32>
    %18 = vector.broadcast %17 : vector<1x128xf32> to vector<8x128xf32>
    %19 = arith.addf %16, %18 : vector<8x128xf32>
    %c0_17 = arith.constant 0 : index
    %c0_18 = arith.constant 0 : index
    %20 = vector.load %arg8[%c0_17, %c0_18] : memref<8x128xf32, #tpu.memory_space<vmem>>, vector<8x128xf32>
    tpu.vector_store %arg8[%c0_17, %c0_18], %19 {strides = array<i32>} : memref<8x128xf32, #tpu.memory_space<vmem>>, vector<8x128xf32>,
    return
  }
  func.func @transform_0(%arg0: i32) -> (i32, i32) {
    %c0_i32 = arith.constant 0 : i32
    %c0_i32_0 = arith.constant 0 : i32
    return %arg0, %c0_i32 : i32, i32
  }
  func.func @transform_1(%arg0: i32) -> (i32, i32) {
    %c0_i32 = arith.constant 0 : i32
    %c0_i32_0 = arith.constant 0 : i32
    %c0_i32_1 = arith.constant 0 : i32
    return %c0_i32, %c0_i32_0 : i32, i32
  }
  func.func @transform_2(%arg0: i32) -> (i32, i32) {
    %c0_i32 = arith.constant 0 : i32
    %c0_i32_0 = arith.constant 0 : i32
    %c0_i32_1 = arith.constant 0 : i32
    return %c0_i32, %c0_i32_0 : i32, i32
  }
  func.func @transform_3(%arg0: i32) -> (i32, i32) {
    %c0_i32 = arith.constant 0 : i32
    %c0_i32_0 = arith.constant 0 : i32
    %c0_i32_1 = arith.constant 0 : i32
    return %c0_i32, %c0_i32_0 : i32, i32
  }
  func.func @transform_4(%arg0: i32) -> (i32, i32) {
    %c0_i32 = arith.constant 0 : i32
    %c0_i32_0 = arith.constant 0 : i32
    %c0_i32_1 = arith.constant 0 : i32
    return %c0_i32, %c0_i32_0 : i32, i32
  }
  func.func @transform_5(%arg0: i32) -> (i32, i32) {
    %c0_i32 = arith.constant 0 : i32
    %c0_i32_0 = arith.constant 0 : i32
    %c0_i32_1 = arith.constant 0 : i32
    return %c0_i32, %c0_i32_0 : i32, i32
  }
  func.func @transform_6(%arg0: i32) -> (i32, i32) {
    %c0_i32 = arith.constant 0 : i32
    %c0_i32_0 = arith.constant 0 : i32
    %c0_i32_1 = arith.constant 0 : i32
    return %c0_i32, %c0_i32_0 : i32, i32
  }
  func.func @transform_7(%arg0: i32) -> (i32, i32) {
    %c0_i32 = arith.constant 0 : i32
    %c0_i32_0 = arith.constant 0 : i32
    return %arg0, %c0_i32 : i32, i32
  }
}

</mosaic_0001>

<llo_original>
// kernel: mlp_forward.1
$region0: #{mlp_forward.1}
  #allocation0 [shape = 'u32[]', space=smem, size = 0x4, offset = 0x4, fixed_abs, tag = 'smem constant byte address 0x4 - core index']
  #allocation1 [shape = 'u32[144,128]{1,0:T(1,128)}', space=vmem, size = 0x12000, scoped, tag = 'internal scratch']
  %s0 = inlined_call_operand.vmem [shape: f32[8,9], index: 0, kind: input, shape index: {}]
  %s1 = inlined_call_operand.vmem [shape: f32[9,384], index: 1, kind: input, shape index: {}]
  %s2 = inlined_call_operand.vmem [shape: f32[1,384], index: 2, kind: input, shape index: {}]
  %s3 = inlined_call_operand.vmem [shape: f32[384,384], index: 3, kind: input, shape index: {}]
  %s4 = inlined_call_operand.vmem [shape: f32[1,384], index: 4, kind: input, shape index: {}]
  %s5 = inlined_call_operand.vmem [shape: f32[384,128], index: 5, kind: input, shape index: {}]
  %s6 = inlined_call_operand.vmem [shape: f32[1,128], index: 6, kind: input, shape index: {}]
  %s7 = inlined_call_operand.vmem [shape: f32[8,128], index: 7, kind: output, shape index: {}]
  %s8 = sld [smem:[#allocation0]]
  $region38: #{mlp_forward.1} parent=0
    _
  %s10 = ssub.s32 1, %s8
  %s11 = scalar_select 0, %s10, %s8
  // Predicated region
  $region2: #{mlp_forward.1} parent=0 // pred_check
    _
  $region3: #{mlp_forward.1} parent=0 // pred_check_branch
    %13 = sbr.rel (0) target = $region5
  $region4: #{mlp_forward.1} parent=0 // pred_region
    _
  $region5: #{mlp_forward.1} parent=0 // pred_fallthru
    _
  // Predicated region
  $region6: #{mlp_forward.1} parent=0 // pred_check
    _
  $region7: #{mlp_forward.1} parent=0 // pred_check_branch
    %15 = sbr.rel (0) target = $region9
  $region8: #{mlp_forward.1} parent=0 // pred_region
    _
  $region9: #{mlp_forward.1} parent=0 // pred_fallthru
    _
  // Predicated region
  $region10: #{mlp_forward.1} parent=0 // pred_check
    _
  $region11: #{mlp_forward.1} parent=0 // pred_check_branch
    %17 = sbr.rel (0) target = $region13
  $region12: #{mlp_forward.1} parent=0 // pred_region
    _
  $region13: #{mlp_forward.1} parent=0 // pred_fallthru
    _
  // Predicated region
  $region14: #{mlp_forward.1} parent=0 // pred_check
    _
  $region15: #{mlp_forward.1} parent=0 // pred_check_branch
    %19 = sbr.rel (0) target = $region17
  $region16: #{mlp_forward.1} parent=0 // pred_region
    _
  $region17: #{mlp_forward.1} parent=0 // pred_fallthru
    _
  // Predicated region
  $region18: #{mlp_forward.1} parent=0 // pred_check
    _
  $region19: #{mlp_forward.1} parent=0 // pred_check_branch
    %21 = sbr.rel (0) target = $region21
  $region20: #{mlp_forward.1} parent=0 // pred_region
    _
  $region21: #{mlp_forward.1} parent=0 // pred_fallthru
    _
  // Predicated region
  $region22: #{mlp_forward.1} parent=0 // pred_check
    _
  $region23: #{mlp_forward.1} parent=0 // pred_check_branch
    %23 = sbr.rel (0) target = $region25
  $region24: #{mlp_forward.1} parent=0 // pred_region
    _
  $region25: #{mlp_forward.1} parent=0 // pred_fallthru
    _
  // Predicated region
  $region26: #{mlp_forward.1} parent=0 // pred_check
    _
  $region27: #{mlp_forward.1} parent=0 // pred_check_branch
    %25 = sbr.rel (0) target = $region29
  $region28: #{mlp_forward.1} parent=0 // pred_region
    _
  $region29: #{mlp_forward.1} parent=0 // pred_fallthru
    _
  %v26 = vld [vmem:[%s0] sm:$0xff]
  %v27 = vld [vmem:[%s1] sm:$0xff]
  %v28 = vld [vmem:[%s1 + $0x8] sm:$0xff]
  %v29 = vld [vmem:[%s1 + $0x10] sm:$0xff]
  %v30 = vld [vmem:[%s1 + $0x18] sm:$0x1]
  %v31 = vld [vmem:[%s1 + $0x20] sm:$0x1]
  %v32 = vld [vmem:[%s1 + $0x28] sm:$0x1]
  %v33 = vld [vmem:[%s2] sm:$0x7]
  %v35 = vlaneseq
  %v36 = vshrl.u32 %v35, 7
  %v37 = vsub.s32 0, %v36
  %v38 = vrot.slane %v33, %v37
  %v39 = vlaneseq
  %v40 = vshrl.u32 %v39, 7
  %v41 = vsub.s32 1, %v40
  %v42 = vrot.slane %v33, %v41
  %v43 = vlaneseq
  %v44 = vshrl.u32 %v43, 7
  %v45 = vsub.s32 2, %v44
  %v46 = vrot.slane %v33, %v45
  %vm50 = vcmask 72704
  %v52 = vsel %vm50, %v26, 0
  %vm54 = vcmask 1040384
  %v56 = vsel %vm54, %v30, 0
  %v59 = vsel %vm54, %v31, 0
  %v62 = vsel %vm54, %v32, 0
  %64 = vmatprep.subr.mxu0 %v28
  %65 = vmatpush1.msra.mxu0 %v27
  %66 = vmatprep.subr.mxu0 %v59
  %67 = vmatpush1.msra.mxu0 %v56
  %68 = vmatprep.subr.mxu0 0.0
  %69 = vmatpush1.msra.mxu0 0.0
  %70 = vmatprep.subr.mxu0 0.0
  %71 = vmatpush1.msra.mxu0 0.0
  %72 = vmatprep.subr.mxu0 0.0
  %73 = vmatpush1.msra.mxu0 0.0
  %74 = vmatprep.subr.mxu0 0.0
  %75 = vmatpush1.msra.mxu0 0.0
  %76 = vmatprep.subr.mxu0 0.0
  %77 = vmatpush1.msra.mxu0 0.0
  %78 = vmatprep.subr.mxu0 0.0
  %79 = vmatpush1.msra.mxu0 0.0
  %80 = vmatprep.subr.mxu0 0.0
  %81 = vmatpush1.msra.mxu0 0.0
  %82 = vmatprep.subr.mxu0 0.0
  %83 = vmatpush1.msra.mxu0 0.0
  %84 = vmatprep.subr.mxu0 0.0
  %85 = vmatpush1.msra.mxu0 0.0
  %86 = vmatprep.subr.mxu0 0.0
  %87 = vmatpush1.msra.mxu0 0.0
  %88 = vmatprep.subr.mxu0 0.0
  %89 = vmatpush1.msra.mxu0 0.0
  %90 = vmatprep.subr.mxu0 0.0
  %91 = vmatpush1.msra.mxu0 0.0
  %92 = vmatprep.subr.mxu0 0.0
  %93 = vmatpush1.msra.mxu0 0.0
  %94 = vmatprep.subr.mxu0 0.0
  %95 = vmatpush1.msra.mxu0 0.0
  %96 = vmatprep.subr.mxu0 0.0
  %97 = vmatpush1.msra.mxu0 0.0
  %98 = vmatprep.subr.mxu0 0.0
  %99 = vmatpush1.msra.mxu0 0.0
  %100 = vmatprep.subr.mxu0 0.0
  %101 = vmatpush1.msra.mxu0 0.0
  %102 = vmatprep.subr.mxu0 0.0
  %103 = vmatpush1.msra.mxu0 0.0
  %104 = vmatprep.subr.mxu0 0.0
  %105 = vmatpush1.msra.mxu0 0.0
  %106 = vmatprep.subr.mxu0 0.0
  %107 = vmatpush1.msra.mxu0 0.0
  %108 = vmatprep.subr.mxu0 0.0
  %109 = vmatpush1.msra.mxu0 0.0
  %110 = vmatprep.subr.mxu0 0.0
  %111 = vmatpush1.msra.mxu0 0.0
  %112 = vmatprep.subr.mxu0 0.0
  %113 = vmatpush1.msra.mxu0 0.0
  %114 = vmatprep.subr.mxu0 0.0
  %115 = vmatpush1.msra.mxu0 0.0
  %116 = vmatprep.subr.mxu0 0.0
  %117 = vmatpush1.msra.mxu0 0.0
  %118 = vmatprep.subr.mxu0 0.0
  %119 = vmatpush1.msra.mxu0 0.0
  %120 = vmatprep.subr.mxu0 0.0
  %121 = vmatpush1.msra.mxu0 0.0
  %122 = vmatprep.subr.mxu0 0.0
  %123 = vmatpush1.msra.mxu0 0.0
  %124 = vmatprep.subr.mxu0 0.0
  %125 = vmatpush1.msra.mxu0 0.0
  %126 = vmatprep.subr.mxu0 0.0
  %127 = vmatpush1.msra.mxu0 0.0
  %128 = vmatprep.mubr.f32.mxu0 0.0
  %129 = vmatmul.mubr.f32.gmra.mrb[0].mxu0 %v52
  %v130 = vpop.f32.mrb[0].mxu0
  %v131 = vadd.f32 %v38, %v130
  %v132 = vpop.f32.mrb[0].mxu0
  %v133 = vadd.f32 %v42, %v132
  %134 = vdwg.mxu0
  %135 = vmatprep.subr.mxu0 0.0
  %136 = vmatpush1.msra.mxu0 %v29
  %137 = vmatprep.subr.mxu0 0.0
  %138 = vmatpush1.msra.mxu0 %v62
  %139 = vmatprep.subr.mxu0 0.0
  %140 = vmatpush1.msra.mxu0 0.0
  %141 = vmatprep.subr.mxu0 0.0
  %142 = vmatpush1.msra.mxu0 0.0
  %143 = vmatprep.subr.mxu0 0.0
  %144 = vmatpush1.msra.mxu0 0.0
  %145 = vmatprep.subr.mxu0 0.0
  %146 = vmatpush1.msra.mxu0 0.0
  %147 = vmatprep.subr.mxu0 0.0
  %148 = vmatpush1.msra.mxu0 0.0
  %149 = vmatprep.subr.mxu0 0.0
  %150 = vmatpush1.msra.mxu0 0.0
  %151 = vmatprep.subr.mxu0 0.0
  %152 = vmatpush1.msra.mxu0 0.0
  %153 = vmatprep.subr.mxu0 0.0
  %154 = vmatpush1.msra.mxu0 0.0
  %155 = vmatprep.subr.mxu0 0.0
  %156 = vmatpush1.msra.mxu0 0.0
  %157 = vmatprep.subr.mxu0 0.0
  %158 = vmatpush1.msra.mxu0 0.0
  %159 = vmatprep.subr.mxu0 0.0
  %160 = vmatpush1.msra.mxu0 0.0
  %161 = vmatprep.subr.mxu0 0.0
  %162 = vmatpush1.msra.mxu0 0.0
  %163 = vmatprep.subr.mxu0 0.0
  %164 = vmatpush1.msra.mxu0 0.0
  %165 = vmatprep.subr.mxu0 0.0
  %166 = vmatpush1.msra.mxu0 0.0
  %167 = vmatprep.subr.mxu0 0.0
  %168 = vmatpush1.msra.mxu0 0.0
  %169 = vmatprep.subr.mxu0 0.0
  %170 = vmatpush1.msra.mxu0 0.0
  %171 = vmatprep.subr.mxu0 0.0
  %172 = vmatpush1.msra.mxu0 0.0
  %173 = vmatprep.subr.mxu0 0.0
  %174 = vmatpush1.msra.mxu0 0.0
  %175 = vmatprep.subr.mxu0 0.0
  %176 = vmatpush1.msra.mxu0 0.0
  %177 = vmatprep.subr.mxu0 0.0
  %178 = vmatpush1.msra.mxu0 0.0
  %179 = vmatprep.subr.mxu0 0.0
  %180 = vmatpush1.msra.mxu0 0.0
  %181 = vmatprep.subr.mxu0 0.0
  %182 = vmatpush1.msra.mxu0 0.0
  %183 = vmatprep.subr.mxu0 0.0
  %184 = vmatpush1.msra.mxu0 0.0
  %185 = vmatprep.subr.mxu0 0.0
  %186 = vmatpush1.msra.mxu0 0.0
  %187 = vmatprep.subr.mxu0 0.0
  %188 = vmatpush1.msra.mxu0 0.0
  %189 = vmatprep.subr.mxu0 0.0
  %190 = vmatpush1.msra.mxu0 0.0
  %191 = vmatprep.subr.mxu0 0.0
  %192 = vmatpush1.msra.mxu0 0.0
  %193 = vmatprep.subr.mxu0 0.0
  %194 = vmatpush1.msra.mxu0 0.0
  %195 = vmatprep.subr.mxu0 0.0
  %196 = vmatpush1.msra.mxu0 0.0
  %197 = vmatprep.subr.mxu0 0.0
  %198 = vmatpush1.msra.mxu0 0.0
  %199 = vmatprep.mubr.f32.mxu0 0.0
  %200 = vmatmul.mubr.f32.gmra.mrb[0].mxu0 %v52
  %v201 = vpop.f32.mrb[0].mxu0
  %v202 = vadd.f32 %v46, %v201
  %v203 = vpop.f32.mrb[0].mxu0
  %204 = vdwg.mxu0
  %v205 = vmax.f32 %v131, 0.0
  %v206 = vmax.f32 %v133, 0.0
  %v207 = vmax.f32 %v202, 0.0
  %v208 = vld [vmem:[%s3] sm:$0xff]
  %v209 = vld [vmem:[%s3 + $0x8] sm:$0xff]
  %v210 = vld [vmem:[%s3 + $0x10] sm:$0xff]
  %v211 = vld [vmem:[%s3 + $0x18] sm:$0xff]
  %v212 = vld [vmem:[%s3 + $0x20] sm:$0xff]
  %v213 = vld [vmem:[%s3 + $0x28] sm:$0xff]
  %v214 = vld [vmem:[%s3 + $0x30] sm:$0xff]
  %v215 = vld [vmem:[%s3 + $0x38] sm:$0xff]
  %v216 = vld [vmem:[%s3 + $0x40] sm:$0xff]
  %v217 = vld [vmem:[%s3 + $0x48] sm:$0xff]
  %v218 = vld [vmem:[%s3 + $0x50] sm:$0xff]
  %v219 = vld [vmem:[%s3 + $0x58] sm:$0xff]
  %v220 = vld [vmem:[%s3 + $0x60] sm:$0xff]
  %v221 = vld [vmem:[%s3 + $0x68] sm:$0xff]
  %v222 = vld [vmem:[%s3 + $0x70] sm:$0xff]
  %v223 = vld [vmem:[%s3 + $0x78] sm:$0xff]
  %v224 = vld [vmem:[%s3 + $0x80] sm:$0xff]
  %v225 = vld [vmem:[%s3 + $0x88] sm:$0xff]
  %v226 = vld [vmem:[%s3 + $0x90] sm:$0xff]
  %v227 = vld [vmem:[%s3 + $0x98] sm:$0xff]
  %v228 = vld [vmem:[%s3 + $0xa0] sm:$0xff]
  %v229 = vld [vmem:[%s3 + $0xa8] sm:$0xff]
  %v230 = vld [vmem:[%s3 + $0xb0] sm:$0xff]
  %v231 = vld [vmem:[%s3 + $0xb8] sm:$0xff]
  %v232 = vld [vmem:[%s3 + $0xc0] sm:$0xff]
  %v233 = vld [vmem:[%s3 + $0xc8] sm:$0xff]
  %v234 = vld [vmem:[%s3 + $0xd0] sm:$0xff]
  %v235 = vld [vmem:[%s3 + $0xd8] sm:$0xff]
  %v236 = vld [vmem:[%s3 + $0xe0] sm:$0xff]
  %v237 = vld [vmem:[%s3 + $0xe8] sm:$0xff]
  %v238 = vld [vmem:[%s3 + $0xf0] sm:$0xff]
  %v239 = vld [vmem:[%s3 + $0xf8] sm:$0xff]
  %v240 = vld [vmem:[%s3 + $0x100] sm:$0xff]
  %v241 = vld [vmem:[%s3 + $0x108] sm:$0xff]
  %v242 = vld [vmem:[%s3 + $0x110] sm:$0xff]
  %v243 = vld [vmem:[%s3 + $0x118] sm:$0xff]
  %v244 = vld [vmem:[%s3 + $0x120] sm:$0xff]
  %v245 = vld [vmem:[%s3 + $0x128] sm:$0xff]
  %v246 = vld [vmem:[%s3 + $0x130] sm:$0xff]
  %v247 = vld [vmem:[%s3 + $0x138] sm:$0xff]
  %v248 = vld [vmem:[%s3 + $0x140] sm:$0xff]
  %v249 = vld [vmem:[%s3 + $0x148] sm:$0xff]
  %v250 = vld [vmem:[%s3 + $0x150] sm:$0xff]
  %v251 = vld [vmem:[%s3 + $0x158] sm:$0xff]
  %v252 = vld [vmem:[%s3 + $0x160] sm:$0xff]
  %v253 = vld [vmem:[%s3 + $0x168] sm:$0xff]
  %v254 = vld [vmem:[%s3 + $0x170] sm:$0xff]
  %v255 = vld [vmem:[%s3 + $0x178] sm:$0xff]
  %v256 = vld [vmem:[%s3 + $0x180] sm:$0xff]
  %v257 = vld [vmem:[%s3 + $0x188] sm:$0xff]
  %v258 = vld [vmem:[%s3 + $0x190] sm:$0xff]
  %v259 = vld [vmem:[%s3 + $0x198] sm:$0xff]
  %v260 = vld [vmem:[%s3 + $0x1a0] sm:$0xff]
  %v261 = vld [vmem:[%s3 + $0x1a8] sm:$0xff]
  %v262 = vld [vmem:[%s3 + $0x1b0] sm:$0xff]
  %v263 = vld [vmem:[%s3 + $0x1b8] sm:$0xff]
  %v264 = vld [vmem:[%s3 + $0x1c0] sm:$0xff]
  %v265 = vld [vmem:[%s3 + $0x1c8] sm:$0xff]
  %v266 = vld [vmem:[%s3 + $0x1d0] sm:$0xff]
  %v267 = vld [vmem:[%s3 + $0x1d8] sm:$0xff]
  %v268 = vld [vmem:[%s3 + $0x1e0] sm:$0xff]
  %v269 = vld [vmem:[%s3 + $0x1e8] sm:$0xff]
  %v270 = vld [vmem:[%s3 + $0x1f0] sm:$0xff]
  %v271 = vld [vmem:[%s3 + $0x1f8] sm:$0xff]
  %v272 = vld [vmem:[%s3 + $0x200] sm:$0xff]
  %v273 = vld [vmem:[%s3 + $0x208] sm:$0xff]
  %v274 = vld [vmem:[%s3 + $0x210] sm:$0xff]
  %v275 = vld [vmem:[%s3 + $0x218] sm:$0xff]
  %v276 = vld [vmem:[%s3 + $0x220] sm:$0xff]
  %v277 = vld [vmem:[%s3 + $0x228] sm:$0xff]
  %v278 = vld [vmem:[%s3 + $0x230] sm:$0xff]
  %v279 = vld [vmem:[%s3 + $0x238] sm:$0xff]
  %v280 = vld [vmem:[%s3 + $0x240] sm:$0xff]
  %v281 = vld [vmem:[%s3 + $0x248] sm:$0xff]
  %v282 = vld [vmem:[%s3 + $0x250] sm:$0xff]
  %v283 = vld [vmem:[%s3 + $0x258] sm:$0xff]
  %v284 = vld [vmem:[%s3 + $0x260] sm:$0xff]
  %v285 = vld [vmem:[%s3 + $0x268] sm:$0xff]
  %v286 = vld [vmem:[%s3 + $0x270] sm:$0xff]
  %v287 = vld [vmem:[%s3 + $0x278] sm:$0xff]
  %v288 = vld [vmem:[%s3 + $0x280] sm:$0xff]
  %v289 = vld [vmem:[%s3 + $0x288] sm:$0xff]
  %v290 = vld [vmem:[%s3 + $0x290] sm:$0xff]
  %v291 = vld [vmem:[%s3 + $0x298] sm:$0xff]
  %v292 = vld [vmem:[%s3 + $0x2a0] sm:$0xff]
  %v293 = vld [vmem:[%s3 + $0x2a8] sm:$0xff]
  %v294 = vld [vmem:[%s3 + $0x2b0] sm:$0xff]
  %v295 = vld [vmem:[%s3 + $0x2b8] sm:$0xff]
  %v296 = vld [vmem:[%s3 + $0x2c0] sm:$0xff]
  %v297 = vld [vmem:[%s3 + $0x2c8] sm:$0xff]
  %v298 = vld [vmem:[%s3 + $0x2d0] sm:$0xff]
  %v299 = vld [vmem:[%s3 + $0x2d8] sm:$0xff]
  %v300 = vld [vmem:[%s3 + $0x2e0] sm:$0xff]
  %v301 = vld [vmem:[%s3 + $0x2e8] sm:$0xff]
  %v302 = vld [vmem:[%s3 + $0x2f0] sm:$0xff]
  %v303 = vld [vmem:[%s3 + $0x2f8] sm:$0xff]
  %v304 = vld [vmem:[%s3 + $0x300] sm:$0xff]
  %v305 = vld [vmem:[%s3 + $0x308] sm:$0xff]
  %v306 = vld [vmem:[%s3 + $0x310] sm:$0xff]
  %v307 = vld [vmem:[%s3 + $0x318] sm:$0xff]
  %v308 = vld [vmem:[%s3 + $0x320] sm:$0xff]
  %v309 = vld [vmem:[%s3 + $0x328] sm:$0xff]
  %v310 = vld [vmem:[%s3 + $0x330] sm:$0xff]
  %v311 = vld [vmem:[%s3 + $0x338] sm:$0xff]
  %v312 = vld [vmem:[%s3 + $0x340] sm:$0xff]
  %v313 = vld [vmem:[%s3 + $0x348] sm:$0xff]
  %v314 = vld [vmem:[%s3 + $0x350] sm:$0xff]
  %v315 = vld [vmem:[%s3 + $0x358] sm:$0xff]
  %v316 = vld [vmem:[%s3 + $0x360] sm:$0xff]
  %v317 = vld [vmem:[%s3 + $0x368] sm:$0xff]
  %v318 = vld [vmem:[%s3 + $0x370] sm:$0xff]
  %v319 = vld [vmem:[%s3 + $0x378] sm:$0xff]
  %v320 = vld [vmem:[%s3 + $0x380] sm:$0xff]
  %v321 = vld [vmem:[%s3 + $0x388] sm:$0xff]
  %v322 = vld [vmem:[%s3 + $0x390] sm:$0xff]
  %v323 = vld [vmem:[%s3 + $0x398] sm:$0xff]
  %v324 = vld [vmem:[%s3 + $0x3a0] sm:$0xff]
  %v325 = vld [vmem:[%s3 + $0x3a8] sm:$0xff]
  %v326 = vld [vmem:[%s3 + $0x3b0] sm:$0xff]
  %v327 = vld [vmem:[%s3 + $0x3b8] sm:$0xff]
  %v328 = vld [vmem:[%s3 + $0x3c0] sm:$0xff]
  %v329 = vld [vmem:[%s3 + $0x3c8] sm:$0xff]
  %v330 = vld [vmem:[%s3 + $0x3d0] sm:$0xff]
  %v331 = vld [vmem:[%s3 + $0x3d8] sm:$0xff]
  %v332 = vld [vmem:[%s3 + $0x3e0] sm:$0xff]
  %v333 = vld [vmem:[%s3 + $0x3e8] sm:$0xff]
  %v334 = vld [vmem:[%s3 + $0x3f0] sm:$0xff]
  %v335 = vld [vmem:[%s3 + $0x3f8] sm:$0xff]
  %v336 = vld [vmem:[%s3 + $0x400] sm:$0xff]
  %v337 = vld [vmem:[%s3 + $0x408] sm:$0xff]
  %v338 = vld [vmem:[%s3 + $0x410] sm:$0xff]
  %v339 = vld [vmem:[%s3 + $0x418] sm:$0xff]
  %v340 = vld [vmem:[%s3 + $0x420] sm:$0xff]
  %v341 = vld [vmem:[%s3 + $0x428] sm:$0xff]
  %v342 = vld [vmem:[%s3 + $0x430] sm:$0xff]
  %v343 = vld [vmem:[%s3 + $0x438] sm:$0xff]
  %v344 = vld [vmem:[%s3 + $0x440] sm:$0xff]
  %v345 = vld [vmem:[%s3 + $0x448] sm:$0xff]
  %v346 = vld [vmem:[%s3 + $0x450] sm:$0xff]
  %v347 = vld [vmem:[%s3 + $0x458] sm:$0xff]
  %v348 = vld [vmem:[%s3 + $0x460] sm:$0xff]
  %v349 = vld [vmem:[%s3 + $0x468] sm:$0xff]
  %v350 = vld [vmem:[%s3 + $0x470] sm:$0xff]
  %v351 = vld [vmem:[%s3 + $0x478] sm:$0xff]
  %v352 = vld [vmem:[%s4] sm:$0x7]
  %v354 = vlaneseq
  %v355 = vshrl.u32 %v354, 7
  %v356 = vsub.s32 0, %v355
  %v357 = vrot.slane %v352, %v356
  %v358 = vlaneseq
  %v359 = vshrl.u32 %v358, 7
  %v360 = vsub.s32 1, %v359
  %v361 = vrot.slane %v352, %v360
  %v362 = vlaneseq
  %v363 = vshrl.u32 %v362, 7
  %v364 = vsub.s32 2, %v363
  %v365 = vrot.slane %v352, %v364
  %369 = vmatprep.subr.mxu0 %v209
  %370 = vmatpush1.msra.mxu0 %v208
  %371 = vmatprep.subr.mxu0 %v212
  %372 = vmatpush1.msra.mxu0 %v211
  %373 = vmatprep.subr.mxu0 %v215
  %374 = vmatpush1.msra.mxu0 %v214
  %375 = vmatprep.subr.mxu0 %v218
  %376 = vmatpush1.msra.mxu0 %v217
  %377 = vmatprep.subr.mxu0 %v221
  %378 = vmatpush1.msra.mxu0 %v220
  %379 = vmatprep.subr.mxu0 %v224
  %380 = vmatpush1.msra.mxu0 %v223
  %381 = vmatprep.subr.mxu0 %v227
  %382 = vmatpush1.msra.mxu0 %v226
  %383 = vmatprep.subr.mxu0 %v230
  %384 = vmatpush1.msra.mxu0 %v229
  %385 = vmatprep.subr.mxu0 %v233
  %386 = vmatpush1.msra.mxu0 %v232
  %387 = vmatprep.subr.mxu0 %v236
  %388 = vmatpush1.msra.mxu0 %v235
  %389 = vmatprep.subr.mxu0 %v239
  %390 = vmatpush1.msra.mxu0 %v238
  %391 = vmatprep.subr.mxu0 %v242
  %392 = vmatpush1.msra.mxu0 %v241
  %393 = vmatprep.subr.mxu0 %v245
  %394 = vmatpush1.msra.mxu0 %v244
  %395 = vmatprep.subr.mxu0 %v248
  %396 = vmatpush1.msra.mxu0 %v247
  %397 = vmatprep.subr.mxu0 %v251
  %398 = vmatpush1.msra.mxu0 %v250
  %399 = vmatprep.subr.mxu0 %v254
  %400 = vmatpush1.msra.mxu0 %v253
  %401 = vmatprep.subr.mxu0 %v257
  %402 = vmatpush1.msra.mxu0 %v256
  %403 = vmatprep.subr.mxu0 %v260
  %404 = vmatpush1.msra.mxu0 %v259
  %405 = vmatprep.subr.mxu0 %v263
  %406 = vmatpush1.msra.mxu0 %v262
  %407 = vmatprep.subr.mxu0 %v266
  %408 = vmatpush1.msra.mxu0 %v265
  %409 = vmatprep.subr.mxu0 %v269
  %410 = vmatpush1.msra.mxu0 %v268
  %411 = vmatprep.subr.mxu0 %v272
  %412 = vmatpush1.msra.mxu0 %v271
  %413 = vmatprep.subr.mxu0 %v275
  %414 = vmatpush1.msra.mxu0 %v274
  %415 = vmatprep.subr.mxu0 %v278
  %416 = vmatpush1.msra.mxu0 %v277
  %417 = vmatprep.subr.mxu0 %v281
  %418 = vmatpush1.msra.mxu0 %v280
  %419 = vmatprep.subr.mxu0 %v284
  %420 = vmatpush1.msra.mxu0 %v283
  %421 = vmatprep.subr.mxu0 %v287
  %422 = vmatpush1.msra.mxu0 %v286
  %423 = vmatprep.subr.mxu0 %v290
  %424 = vmatpush1.msra.mxu0 %v289
  %425 = vmatprep.subr.mxu0 %v293
  %426 = vmatpush1.msra.mxu0 %v292
  %427 = vmatprep.subr.mxu0 %v296
  %428 = vmatpush1.msra.mxu0 %v295
  %429 = vmatprep.subr.mxu0 %v299
  %430 = vmatpush1.msra.mxu0 %v298
  %431 = vmatprep.subr.mxu0 %v302
  %432 = vmatpush1.msra.mxu0 %v301
  %433 = vmatprep.mubr.f32.mxu0 %v206
  %434 = vmatmul.mubr.f32.gmra.mrb[0].mxu0 %v205
  %v435 = vpop.f32.mrb[0].mxu0
  %v436 = vadd.f32 %v357, %v435
  %v437 = vpop.f32.mrb[0].mxu0
  %v438 = vadd.f32 %v361, %v437
  %439 = vdwg.mxu0
  %440 = vmatprep.subr.mxu0 %v305
  %441 = vmatpush1.msra.mxu0 %v304
  %442 = vmatprep.subr.mxu0 %v308
  %443 = vmatpush1.msra.mxu0 %v307
  %444 = vmatprep.subr.mxu0 %v311
  %445 = vmatpush1.msra.mxu0 %v310
  %446 = vmatprep.subr.mxu0 %v314
  %447 = vmatpush1.msra.mxu0 %v313
  %448 = vmatprep.subr.mxu0 %v317
  %449 = vmatpush1.msra.mxu0 %v316
  %450 = vmatprep.subr.mxu0 %v320
  %451 = vmatpush1.msra.mxu0 %v319
  %452 = vmatprep.subr.mxu0 %v323
  %453 = vmatpush1.msra.mxu0 %v322
  %454 = vmatprep.subr.mxu0 %v326
  %455 = vmatpush1.msra.mxu0 %v325
  %456 = vmatprep.subr.mxu0 %v329
  %457 = vmatpush1.msra.mxu0 %v328
  %458 = vmatprep.subr.mxu0 %v332
  %459 = vmatpush1.msra.mxu0 %v331
  %460 = vmatprep.subr.mxu0 %v335
  %461 = vmatpush1.msra.mxu0 %v334
  %462 = vmatprep.subr.mxu0 %v338
  %463 = vmatpush1.msra.mxu0 %v337
  %464 = vmatprep.subr.mxu0 %v341
  %465 = vmatpush1.msra.mxu0 %v340
  %466 = vmatprep.subr.mxu0 %v344
  %467 = vmatpush1.msra.mxu0 %v343
  %468 = vmatprep.subr.mxu0 %v347
  %469 = vmatpush1.msra.mxu0 %v346
  %470 = vmatprep.subr.mxu0 %v350
  %471 = vmatpush1.msra.mxu0 %v349
  %472 = vmatprep.subr.mxu0 0.0
  %473 = vmatpush1.msra.mxu0 0.0
  %474 = vmatprep.subr.mxu0 0.0
  %475 = vmatpush1.msra.mxu0 0.0
  %476 = vmatprep.subr.mxu0 0.0
  %477 = vmatpush1.msra.mxu0 0.0
  %478 = vmatprep.subr.mxu0 0.0
  %479 = vmatpush1.msra.mxu0 0.0
  %480 = vmatprep.subr.mxu0 0.0
  %481 = vmatpush1.msra.mxu0 0.0
  %482 = vmatprep.subr.mxu0 0.0
  %483 = vmatpush1.msra.mxu0 0.0
  %484 = vmatprep.subr.mxu0 0.0
  %485 = vmatpush1.msra.mxu0 0.0
  %486 = vmatprep.subr.mxu0 0.0
  %487 = vmatpush1.msra.mxu0 0.0
  %488 = vmatprep.subr.mxu0 0.0
  %489 = vmatpush1.msra.mxu0 0.0
  %490 = vmatprep.subr.mxu0 0.0
  %491 = vmatpush1.msra.mxu0 0.0
  %492 = vmatprep.subr.mxu0 0.0
  %493 = vmatpush1.msra.mxu0 0.0
  %494 = vmatprep.subr.mxu0 0.0
  %495 = vmatpush1.msra.mxu0 0.0
  %496 = vmatprep.subr.mxu0 0.0
  %497 = vmatpush1.msra.mxu0 0.0
  %498 = vmatprep.subr.mxu0 0.0
  %499 = vmatpush1.msra.mxu0 0.0
  %500 = vmatprep.subr.mxu0 0.0
  %501 = vmatpush1.msra.mxu0 0.0
  %502 = vmatprep.subr.mxu0 0.0
  %503 = vmatpush1.msra.mxu0 0.0
  %504 = vmatprep.mubr.f32.mxu0 0.0
  %505 = vmatmul.mubr.f32.gmra.mrb[0].mxu0 %v207
  %v506 = vpop.f32.mrb[0].mxu0
  %v507 = vadd.f32 %v436, %v506
  %v508 = vpop.f32.mrb[0].mxu0
  %v509 = vadd.f32 %v438, %v508
  %510 = vdwg.mxu0
  %511 = vmatprep.subr.mxu0 0.0
  %512 = vmatpush1.msra.mxu0 %v210
  %513 = vmatprep.subr.mxu0 0.0
  %514 = vmatpush1.msra.mxu0 %v213
  %515 = vmatprep.subr.mxu0 0.0
  %516 = vmatpush1.msra.mxu0 %v216
  %517 = vmatprep.subr.mxu0 0.0
  %518 = vmatpush1.msra.mxu0 %v219
  %519 = vmatprep.subr.mxu0 0.0
  %520 = vmatpush1.msra.mxu0 %v222
  %521 = vmatprep.subr.mxu0 0.0
  %522 = vmatpush1.msra.mxu0 %v225
  %523 = vmatprep.subr.mxu0 0.0
  %524 = vmatpush1.msra.mxu0 %v228
  %525 = vmatprep.subr.mxu0 0.0
  %526 = vmatpush1.msra.mxu0 %v231
  %527 = vmatprep.subr.mxu0 0.0
  %528 = vmatpush1.msra.mxu0 %v234
  %529 = vmatprep.subr.mxu0 0.0
  %530 = vmatpush1.msra.mxu0 %v237
  %531 = vmatprep.subr.mxu0 0.0
  %532 = vmatpush1.msra.mxu0 %v240
  %533 = vmatprep.subr.mxu0 0.0
  %534 = vmatpush1.msra.mxu0 %v243
  %535 = vmatprep.subr.mxu0 0.0
  %536 = vmatpush1.msra.mxu0 %v246
  %537 = vmatprep.subr.mxu0 0.0
  %538 = vmatpush1.msra.mxu0 %v249
  %539 = vmatprep.subr.mxu0 0.0
  %540 = vmatpush1.msra.mxu0 %v252
  %541 = vmatprep.subr.mxu0 0.0
  %542 = vmatpush1.msra.mxu0 %v255
  %543 = vmatprep.subr.mxu0 0.0
  %544 = vmatpush1.msra.mxu0 %v258
  %545 = vmatprep.subr.mxu0 0.0
  %546 = vmatpush1.msra.mxu0 %v261
  %547 = vmatprep.subr.mxu0 0.0
  %548 = vmatpush1.msra.mxu0 %v264
  %549 = vmatprep.subr.mxu0 0.0
  %550 = vmatpush1.msra.mxu0 %v267
  %551 = vmatprep.subr.mxu0 0.0
  %552 = vmatpush1.msra.mxu0 %v270
  %553 = vmatprep.subr.mxu0 0.0
  %554 = vmatpush1.msra.mxu0 %v273
  %555 = vmatprep.subr.mxu0 0.0
  %556 = vmatpush1.msra.mxu0 %v276
  %557 = vmatprep.subr.mxu0 0.0
  %558 = vmatpush1.msra.mxu0 %v279
  %559 = vmatprep.subr.mxu0 0.0
  %560 = vmatpush1.msra.mxu0 %v282
  %561 = vmatprep.subr.mxu0 0.0
  %562 = vmatpush1.msra.mxu0 %v285
  %563 = vmatprep.subr.mxu0 0.0
  %564 = vmatpush1.msra.mxu0 %v288
  %565 = vmatprep.subr.mxu0 0.0
  %566 = vmatpush1.msra.mxu0 %v291
  %567 = vmatprep.subr.mxu0 0.0
  %568 = vmatpush1.msra.mxu0 %v294
  %569 = vmatprep.subr.mxu0 0.0
  %570 = vmatpush1.msra.mxu0 %v297
  %571 = vmatprep.subr.mxu0 0.0
  %572 = vmatpush1.msra.mxu0 %v300
  %573 = vmatprep.subr.mxu0 0.0
  %574 = vmatpush1.msra.mxu0 %v303
  %575 = vmatprep.mubr.f32.mxu0 %v206
  %576 = vmatmul.mubr.f32.gmra.mrb[0].mxu0 %v205
  %v577 = vpop.f32.mrb[0].mxu0
  %v578 = vadd.f32 %v365, %v577
  %v579 = vpop.f32.mrb[0].mxu0
  %580 = vdwg.mxu0
  %581 = vmatprep.subr.mxu0 0.0
  %582 = vmatpush1.msra.mxu0 %v306
  %583 = vmatprep.subr.mxu0 0.0
  %584 = vmatpush1.msra.mxu0 %v309
  %585 = vmatprep.subr.mxu0 0.0
  %586 = vmatpush1.msra.mxu0 %v312
  %587 = vmatprep.subr.mxu0 0.0
  %588 = vmatpush1.msra.mxu0 %v315
  %589 = vmatprep.subr.mxu0 0.0
  %590 = vmatpush1.msra.mxu0 %v318
  %591 = vmatprep.subr.mxu0 0.0
  %592 = vmatpush1.msra.mxu0 %v321
  %593 = vmatprep.subr.mxu0 0.0
  %594 = vmatpush1.msra.mxu0 %v324
  %595 = vmatprep.subr.mxu0 0.0
  %596 = vmatpush1.msra.mxu0 %v327
  %597 = vmatprep.subr.mxu0 0.0
  %598 = vmatpush1.msra.mxu0 %v330
  %599 = vmatprep.subr.mxu0 0.0
  %600 = vmatpush1.msra.mxu0 %v333
  %601 = vmatprep.subr.mxu0 0.0
  %602 = vmatpush1.msra.mxu0 %v336
  %603 = vmatprep.subr.mxu0 0.0
  %604 = vmatpush1.msra.mxu0 %v339
  %605 = vmatprep.subr.mxu0 0.0
  %606 = vmatpush1.msra.mxu0 %v342
  %607 = vmatprep.subr.mxu0 0.0
  %608 = vmatpush1.msra.mxu0 %v345
  %609 = vmatprep.subr.mxu0 0.0
  %610 = vmatpush1.msra.mxu0 %v348
  %611 = vmatprep.subr.mxu0 0.0
  %612 = vmatpush1.msra.mxu0 %v351
  %613 = vmatprep.subr.mxu0 0.0
  %614 = vmatpush1.msra.mxu0 0.0
  %615 = vmatprep.subr.mxu0 0.0
  %616 = vmatpush1.msra.mxu0 0.0
  %617 = vmatprep.subr.mxu0 0.0
  %618 = vmatpush1.msra.mxu0 0.0
  %619 = vmatprep.subr.mxu0 0.0
  %620 = vmatpush1.msra.mxu0 0.0
  %621 = vmatprep.subr.mxu0 0.0
  %622 = vmatpush1.msra.mxu0 0.0
  %623 = vmatprep.subr.mxu0 0.0
  %624 = vmatpush1.msra.mxu0 0.0
  %625 = vmatprep.subr.mxu0 0.0
  %626 = vmatpush1.msra.mxu0 0.0
  %627 = vmatprep.subr.mxu0 0.0
  %628 = vmatpush1.msra.mxu0 0.0
  %629 = vmatprep.subr.mxu0 0.0
  %630 = vmatpush1.msra.mxu0 0.0
  %631 = vmatprep.subr.mxu0 0.0
  %632 = vmatpush1.msra.mxu0 0.0
  %633 = vmatprep.subr.mxu0 0.0
  %634 = vmatpush1.msra.mxu0 0.0
  %635 = vmatprep.subr.mxu0 0.0
  %636 = vmatpush1.msra.mxu0 0.0
  %637 = vmatprep.subr.mxu0 0.0
  %638 = vmatpush1.msra.mxu0 0.0
  %639 = vmatprep.subr.mxu0 0.0
  %640 = vmatpush1.msra.mxu0 0.0
  %641 = vmatprep.subr.mxu0 0.0
  %642 = vmatpush1.msra.mxu0 0.0
  %643 = vmatprep.subr.mxu0 0.0
  %644 = vmatpush1.msra.mxu0 0.0
  %645 = vmatprep.mubr.f32.mxu0 0.0
  %646 = vmatmul.mubr.f32.gmra.mrb[0].mxu0 %v207
  %v647 = vpop.f32.mrb[0].mxu0
  %v648 = vadd.f32 %v578, %v647
  %v649 = vpop.f32.mrb[0].mxu0
  %650 = vdwg.mxu0
  %v651 = vmax.f32 %v507, 0.0
  %v652 = vmax.f32 %v509, 0.0
  %v653 = vmax.f32 %v648, 0.0
  %v654 = vld [vmem:[%s5] sm:$0xff]
  %v655 = vld [vmem:[%s5 + $0x8] sm:$0xff]
  %v656 = vld [vmem:[%s5 + $0x10] sm:$0xff]
  %v657 = vld [vmem:[%s5 + $0x18] sm:$0xff]
  %v658 = vld [vmem:[%s5 + $0x20] sm:$0xff]
  %v659 = vld [vmem:[%s5 + $0x28] sm:$0xff]
  %v660 = vld [vmem:[%s5 + $0x30] sm:$0xff]
  %v661 = vld [vmem:[%s5 + $0x38] sm:$0xff]
  %v662 = vld [vmem:[%s5 + $0x40] sm:$0xff]
  %v663 = vld [vmem:[%s5 + $0x48] sm:$0xff]
  %v664 = vld [vmem:[%s5 + $0x50] sm:$0xff]
  %v665 = vld [vmem:[%s5 + $0x58] sm:$0xff]
  %v666 = vld [vmem:[%s5 + $0x60] sm:$0xff]
  %v667 = vld [vmem:[%s5 + $0x68] sm:$0xff]
  %v668 = vld [vmem:[%s5 + $0x70] sm:$0xff]
  %v669 = vld [vmem:[%s5 + $0x78] sm:$0xff]
  %v670 = vld [vmem:[%s5 + $0x80] sm:$0xff]
  %v671 = vld [vmem:[%s5 + $0x88] sm:$0xff]
  %v672 = vld [vmem:[%s5 + $0x90] sm:$0xff]
  %v673 = vld [vmem:[%s5 + $0x98] sm:$0xff]
  %v674 = vld [vmem:[%s5 + $0xa0] sm:$0xff]
  %v675 = vld [vmem:[%s5 + $0xa8] sm:$0xff]
  %v676 = vld [vmem:[%s5 + $0xb0] sm:$0xff]
  %v677 = vld [vmem:[%s5 + $0xb8] sm:$0xff]
  %v678 = vld [vmem:[%s5 + $0xc0] sm:$0xff]
  %v679 = vld [vmem:[%s5 + $0xc8] sm:$0xff]
  %v680 = vld [vmem:[%s5 + $0xd0] sm:$0xff]
  %v681 = vld [vmem:[%s5 + $0xd8] sm:$0xff]
  %v682 = vld [vmem:[%s5 + $0xe0] sm:$0xff]
  %v683 = vld [vmem:[%s5 + $0xe8] sm:$0xff]
  %v684 = vld [vmem:[%s5 + $0xf0] sm:$0xff]
  %v685 = vld [vmem:[%s5 + $0xf8] sm:$0xff]
  %v686 = vld [vmem:[%s5 + $0x100] sm:$0xff]
  %v687 = vld [vmem:[%s5 + $0x108] sm:$0xff]
  %v688 = vld [vmem:[%s5 + $0x110] sm:$0xff]
  %v689 = vld [vmem:[%s5 + $0x118] sm:$0xff]
  %v690 = vld [vmem:[%s5 + $0x120] sm:$0xff]
  %v691 = vld [vmem:[%s5 + $0x128] sm:$0xff]
  %v692 = vld [vmem:[%s5 + $0x130] sm:$0xff]
  %v693 = vld [vmem:[%s5 + $0x138] sm:$0xff]
  %v694 = vld [vmem:[%s5 + $0x140] sm:$0xff]
  %v695 = vld [vmem:[%s5 + $0x148] sm:$0xff]
  %v696 = vld [vmem:[%s5 + $0x150] sm:$0xff]
  %v697 = vld [vmem:[%s5 + $0x158] sm:$0xff]
  %v698 = vld [vmem:[%s5 + $0x160] sm:$0xff]
  %v699 = vld [vmem:[%s5 + $0x168] sm:$0xff]
  %v700 = vld [vmem:[%s5 + $0x170] sm:$0xff]
  %v701 = vld [vmem:[%s5 + $0x178] sm:$0xff]
  %v702 = vld [vmem:[%s6] sm:$0x1]
  %v704 = vlaneseq
  %v705 = vshrl.u32 %v704, 7
  %v706 = vsub.s32 0, %v705
  %v707 = vrot.slane %v702, %v706
  %709 = vmatprep.subr.mxu0 0.0
  %710 = vmatpush1.msra.mxu0 %v654
  %711 = vmatprep.subr.mxu0 0.0
  %712 = vmatpush1.msra.mxu0 %v655
  %713 = vmatprep.subr.mxu0 0.0
  %714 = vmatpush1.msra.mxu0 %v656
  %715 = vmatprep.subr.mxu0 0.0
  %716 = vmatpush1.msra.mxu0 %v657
  %717 = vmatprep.subr.mxu0 0.0
  %718 = vmatpush1.msra.mxu0 %v658
  %719 = vmatprep.subr.mxu0 0.0
  %720 = vmatpush1.msra.mxu0 %v659
  %721 = vmatprep.subr.mxu0 0.0
  %722 = vmatpush1.msra.mxu0 %v660
  %723 = vmatprep.subr.mxu0 0.0
  %724 = vmatpush1.msra.mxu0 %v661
  %725 = vmatprep.subr.mxu0 0.0
  %726 = vmatpush1.msra.mxu0 %v662
  %727 = vmatprep.subr.mxu0 0.0
  %728 = vmatpush1.msra.mxu0 %v663
  %729 = vmatprep.subr.mxu0 0.0
  %730 = vmatpush1.msra.mxu0 %v664
  %731 = vmatprep.subr.mxu0 0.0
  %732 = vmatpush1.msra.mxu0 %v665
  %733 = vmatprep.subr.mxu0 0.0
  %734 = vmatpush1.msra.mxu0 %v666
  %735 = vmatprep.subr.mxu0 0.0
  %736 = vmatpush1.msra.mxu0 %v667
  %737 = vmatprep.subr.mxu0 0.0
  %738 = vmatpush1.msra.mxu0 %v668
  %739 = vmatprep.subr.mxu0 0.0
  %740 = vmatpush1.msra.mxu0 %v669
  %741 = vmatprep.subr.mxu0 0.0
  %742 = vmatpush1.msra.mxu0 %v670
  %743 = vmatprep.subr.mxu0 0.0
  %744 = vmatpush1.msra.mxu0 %v671
  %745 = vmatprep.subr.mxu0 0.0
  %746 = vmatpush1.msra.mxu0 %v672
  %747 = vmatprep.subr.mxu0 0.0
  %748 = vmatpush1.msra.mxu0 %v673
  %749 = vmatprep.subr.mxu0 0.0
  %750 = vmatpush1.msra.mxu0 %v674
  %751 = vmatprep.subr.mxu0 0.0
  %752 = vmatpush1.msra.mxu0 %v675
  %753 = vmatprep.subr.mxu0 0.0
  %754 = vmatpush1.msra.mxu0 %v676
  %755 = vmatprep.subr.mxu0 0.0
  %756 = vmatpush1.msra.mxu0 %v677
  %757 = vmatprep.subr.mxu0 0.0
  %758 = vmatpush1.msra.mxu0 %v678
  %759 = vmatprep.subr.mxu0 0.0
  %760 = vmatpush1.msra.mxu0 %v679
  %761 = vmatprep.subr.mxu0 0.0
  %762 = vmatpush1.msra.mxu0 %v680
  %763 = vmatprep.subr.mxu0 0.0
  %764 = vmatpush1.msra.mxu0 %v681
  %765 = vmatprep.subr.mxu0 0.0
  %766 = vmatpush1.msra.mxu0 %v682
  %767 = vmatprep.subr.mxu0 0.0
  %768 = vmatpush1.msra.mxu0 %v683
  %769 = vmatprep.subr.mxu0 0.0
  %770 = vmatpush1.msra.mxu0 %v684
  %771 = vmatprep.subr.mxu0 0.0
  %772 = vmatpush1.msra.mxu0 %v685
  %773 = vmatprep.mubr.f32.mxu0 %v652
  %774 = vmatmul.mubr.f32.gmra.mrb[0].mxu0 %v651
  %v775 = vpop.f32.mrb[0].mxu0
  %v776 = vadd.f32 %v707, %v775
  %v777 = vpop.f32.mrb[0].mxu0
  %778 = vdwg.mxu0
  %779 = vmatprep.subr.mxu0 0.0
  %780 = vmatpush1.msra.mxu0 %v686
  %781 = vmatprep.subr.mxu0 0.0
  %782 = vmatpush1.msra.mxu0 %v687
  %783 = vmatprep.subr.mxu0 0.0
  %784 = vmatpush1.msra.mxu0 %v688
  %785 = vmatprep.subr.mxu0 0.0
  %786 = vmatpush1.msra.mxu0 %v689
  %787 = vmatprep.subr.mxu0 0.0
  %788 = vmatpush1.msra.mxu0 %v690
  %789 = vmatprep.subr.mxu0 0.0
  %790 = vmatpush1.msra.mxu0 %v691
  %791 = vmatprep.subr.mxu0 0.0
  %792 = vmatpush1.msra.mxu0 %v692
  %793 = vmatprep.subr.mxu0 0.0
  %794 = vmatpush1.msra.mxu0 %v693
  %795 = vmatprep.subr.mxu0 0.0
  %796 = vmatpush1.msra.mxu0 %v694
  %797 = vmatprep.subr.mxu0 0.0
  %798 = vmatpush1.msra.mxu0 %v695
  %799 = vmatprep.subr.mxu0 0.0
  %800 = vmatpush1.msra.mxu0 %v696
  %801 = vmatprep.subr.mxu0 0.0
  %802 = vmatpush1.msra.mxu0 %v697
  %803 = vmatprep.subr.mxu0 0.0
  %804 = vmatpush1.msra.mxu0 %v698
  %805 = vmatprep.subr.mxu0 0.0
  %806 = vmatpush1.msra.mxu0 %v699
  %807 = vmatprep.subr.mxu0 0.0
  %808 = vmatpush1.msra.mxu0 %v700
  %809 = vmatprep.subr.mxu0 0.0
  %810 = vmatpush1.msra.mxu0 %v701
  %811 = vmatprep.subr.mxu0 0.0
  %812 = vmatpush1.msra.mxu0 0.0
  %813 = vmatprep.subr.mxu0 0.0
  %814 = vmatpush1.msra.mxu0 0.0
  %815 = vmatprep.subr.mxu0 0.0
  %816 = vmatpush1.msra.mxu0 0.0
  %817 = vmatprep.subr.mxu0 0.0
  %818 = vmatpush1.msra.mxu0 0.0
  %819 = vmatprep.subr.mxu0 0.0
  %820 = vmatpush1.msra.mxu0 0.0
  %821 = vmatprep.subr.mxu0 0.0
  %822 = vmatpush1.msra.mxu0 0.0
  %823 = vmatprep.subr.mxu0 0.0
  %824 = vmatpush1.msra.mxu0 0.0
  %825 = vmatprep.subr.mxu0 0.0
  %826 = vmatpush1.msra.mxu0 0.0
  %827 = vmatprep.subr.mxu0 0.0
  %828 = vmatpush1.msra.mxu0 0.0
  %829 = vmatprep.subr.mxu0 0.0
  %830 = vmatpush1.msra.mxu0 0.0
  %831 = vmatprep.subr.mxu0 0.0
  %832 = vmatpush1.msra.mxu0 0.0
  %833 = vmatprep.subr.mxu0 0.0
  %834 = vmatpush1.msra.mxu0 0.0
  %835 = vmatprep.subr.mxu0 0.0
  %836 = vmatpush1.msra.mxu0 0.0
  %837 = vmatprep.subr.mxu0 0.0
  %838 = vmatpush1.msra.mxu0 0.0
  %839 = vmatprep.subr.mxu0 0.0
  %840 = vmatpush1.msra.mxu0 0.0
  %841 = vmatprep.subr.mxu0 0.0
  %842 = vmatpush1.msra.mxu0 0.0
  %843 = vmatprep.mubr.f32.mxu0 0.0
  %844 = vmatmul.mubr.f32.gmra.mrb[0].mxu0 %v653
  %v845 = vpop.f32.mrb[0].mxu0
  %v846 = vadd.f32 %v776, %v845
  %v847 = vpop.f32.mrb[0].mxu0
  %848 = vdwg.mxu0
  %849 = vst [vmem:[%s7] sm:$0xff] %v846
  // Predicated region
  $region30: #{mlp_forward.1} parent=0 // pred_check
    _
  $region31: #{mlp_forward.1} parent=0 // pred_check_branch
    %851 = sbr.rel (0) target = $region33
  $region32: #{mlp_forward.1} parent=0 // pred_region
    _
  $region33: #{mlp_forward.1} parent=0 // pred_fallthru
    _
  // Predicated region
  $region34: #{mlp_forward.1} parent=0 // pred_check
    _
  $region35: #{mlp_forward.1} parent=0 // pred_check_branch
    %853 = sbr.rel (0) target = $region37
  $region36: #{mlp_forward.1} parent=0 // pred_region
    _
  $region37: #{mlp_forward.1} parent=0 // pred_fallthru
    _

</llo_original>
